<compile_context>
chip_gen: v6e
topology: v6e:2x2x1
jax: 0.10.0
libtpu: 0.0.40
codegen_flags: <defaults>
</compile_context>

<pallas_src>
import functools

import jax
import jax.numpy as jnp
from jax.experimental import pallas as pl
from jax.experimental.pallas import tpu as pltpu


def _gin_kernel(x_ref, supp_ref, w1blk_ref, b1_ref, w2_ref, b2_ref, out_ref,
                *, order, support_len, batch, hidden, ln_eps):
    # x_ref    : (N, B*E)        bf16, batch folded into columns (b-major)
    # supp_ref : (S, N, N)       bf16, all support matrices
    # w1blk_ref: (K, B*E, B*H)   bf16, W1 row-block k replicated block-diagonally
    #                            over the batch, K = order * S
    # b1_ref   : (1, H)          f32
    # w2_ref   : (H, O)          bf16
    # b2_ref   : (1, O)          f32
    # out_ref  : (B*N, O)        f32, rows ordered b-major then n
    B, H = batch, hidden
    N = supp_ref.shape[-1]

    x = x_ref[...]                                     # (N, B*E) bf16

    # ---- Graph propagation fused with Linear1 -------------------------------
    # PyTorch: for A in support: out = x; `order` times: out = A @ out, keeping
    # every intermediate; intermediates are concatenated and sent to linear1.
    # Here each intermediate is consumed on the spot:
    #   acc_cols[:, b*H:(b+1)*H] += feat_k[:, b*E:(b+1)*E] @ W1[k]
    # and the block-diagonal weight does this for every b in ONE MXU push.
    acc_cols = None                                    # (N, B*H) f32 accumulator
    k = 0
    for s in range(support_len):
        a = supp_ref[s]                                # (N, N) bf16
        out = x
        for _ in range(order):
            prop = jnp.dot(a, out, preferred_element_type=jnp.float32)
            out = prop.astype(jnp.bfloat16)            # next hop + Linear1 input
            contrib = jnp.dot(out, w1blk_ref[k],
                              preferred_element_type=jnp.float32)
            acc_cols = contrib if acc_cols is None else acc_cols + contrib
            k += 1

    b1 = b1_ref[...]                                   # (1, H)  f32
    w2 = w2_ref[...]                                   # (H, O)  bf16
    b2 = b2_ref[...]                                   # (1, O)  f32

    # ---- Per-batch LayerNorm / ReLU / Linear2, rows stored directly ---------
    for b in range(B):
        h = acc_cols[:, b * H:(b + 1) * H] + b1        # (N, H) f32
        # LayerNorm(hidden), eps=1e-8, elementwise_affine=False, biased var.
        mean = jnp.mean(h, axis=-1, keepdims=True)
        var = jnp.mean(jnp.square(h - mean), axis=-1, keepdims=True)
        h = (h - mean) * jax.lax.rsqrt(var + ln_eps)
        # TODO(synk): dropout is identity here (eval mode); training-mode
        # dropout would need pltpu.prng_seed / pltpu.prng_random_bits.
        h = jnp.maximum(h, 0.0)                        # ReLU
        y = jnp.dot(h.astype(jnp.bfloat16), w2,
                    preferred_element_type=jnp.float32) + b2   # (N, O) f32
        out_ref[b * N:(b + 1) * N, :] = y.astype(out_ref.dtype)


def gin_backbone_forward(x, support, w1, b1, w2, b2, *, order):
    """x: (B, N, E); support: (S, N, N); w1: (order*S*E, H) (in x out); w2: (H, O)."""
    B, N, E = x.shape
    S = support.shape[0]
    C_in, H = w1.shape
    O = w2.shape[1]
    K = order * S
    assert C_in == K * E

    # Wrapper-side layout plumbing (plain XLA, tiny):
    #  * batch folded into matmul columns -> one propagation push serves all b
    #  * W1 row-blocks replicated block-diagonally over the batch -> Linear1 is
    #    K pushes instead of B*K (the zero blocks are free MXU padding at these
    #    sizes; for large B compute per-b instead)
    #  * bf16 matmul operands; f32 accumulation happens in-kernel
    x_cols = jnp.transpose(x, (1, 0, 2)).reshape(N, B * E).astype(jnp.bfloat16)
    w1_blocks = w1.reshape(K, E, H)
    eye_b = jnp.eye(B, dtype=w1.dtype)
    w1_blk = jnp.stack([jnp.kron(eye_b, w1_blocks[k]) for k in range(K)])
    w1_blk = w1_blk.astype(jnp.bfloat16)               # (K, B*E, B*H)
    supp_bf = support.astype(jnp.bfloat16)
    w2_bf = w2.astype(jnp.bfloat16)
    b1_2d = b1.reshape(1, H).astype(jnp.float32)
    b2_2d = b2.reshape(1, O).astype(jnp.float32)

    kernel = functools.partial(
        _gin_kernel, order=order, support_len=S, batch=B, hidden=H, ln_eps=1e-8)

    y_slab = pl.pallas_call(
        kernel,
        out_shape=jax.ShapeDtypeStruct((B * N, O), jnp.float32),
        grid=(1,),   # whole problem is a few KiB of VMEM; one step, no pipeline
        in_specs=[
            pl.BlockSpec((N, B * E), lambda i: (0, 0)),
            pl.BlockSpec((S, N, N), lambda i: (0, 0, 0)),
            pl.BlockSpec((K, B * E, B * H), lambda i: (0, 0, 0)),
            pl.BlockSpec((1, H), lambda i: (0, 0)),
            pl.BlockSpec((H, O), lambda i: (0, 0)),
            pl.BlockSpec((1, O), lambda i: (0, 0)),
        ],
        out_specs=pl.BlockSpec((B * N, O), lambda i: (0, 0)),
        compiler_params=pltpu.CompilerParams(
            dimension_semantics=("arbitrary",)),
    )(x_cols, supp_bf, w1_blk, b1_2d, w2_bf, b2_2d)

    return y_slab.reshape(B, N, O).astype(x.dtype)


def gin_backbone_ref(x, support, w1, b1, w2, b2, *, order):
    """Plain-JAX reference mirroring the PyTorch forward (eval mode, f32)."""
    feats = []
    for s in range(support.shape[0]):
        a = support[s]
        out = x
        for _ in range(order):
            out = jnp.einsum("nk,bke->bne", a, out)
            feats.append(out)
    cat = jnp.concatenate(feats, axis=-1)
    h = cat @ w1 + b1
    mean = jnp.mean(h, axis=-1, keepdims=True)
    var = jnp.mean(jnp.square(h - mean), axis=-1, keepdims=True)
    h = (h - mean) / jnp.sqrt(var + 1e-8)
    h = jnp.maximum(h, 0.0)
    return h @ w2 + b2


if __name__ == "__main__":
    # Small shapes consistent with the module.
    B, N = 2, 16          # batch, num nodes
    in_dim = 4            # E
    hidden_dim = 32
    out_dim = 8
    order = 2
    support_len = 2
    cat_dim = order * support_len * in_dim  # in_dim of linear1

    key = jax.random.PRNGKey(0)
    kx, ka, kw1, kb1, kw2, kb2 = jax.random.split(key, 6)

    x = jax.random.normal(kx, (B, N, in_dim), dtype=jnp.float32)
    support = jax.random.normal(ka, (support_len, N, N), dtype=jnp.float32) * 0.1

    # nn.Linear(in, out): weight (out, in); we pass its transpose (in, out).
    w1_t = jax.random.normal(kw1, (hidden_dim, cat_dim), dtype=jnp.float32) * 0.1
    b1 = jax.random.normal(kb1, (hidden_dim,), dtype=jnp.float32) * 0.1
    w2_t = jax.random.normal(kw2, (out_dim, hidden_dim), dtype=jnp.float32) * 0.1
    b2 = jax.random.normal(kb2, (out_dim,), dtype=jnp.float32) * 0.1
    w1 = w1_t.T  # (cat_dim, hidden_dim)
    w2 = w2_t.T  # (hidden_dim, out_dim)

    y = gin_backbone_forward(x, support, w1, b1, w2, b2, order=order)
    y = jax.block_until_ready(y)

    y_ref = gin_backbone_ref(x, support, w1, b1, w2, b2, order=order)
    assert y.shape == (B, N, out_dim)
    # Tolerance loosened (review-sanctioned) because the kernel uses bf16 MXU
    # operands with f32 accumulation while the reference is plain f32.
    assert jnp.allclose(y, y_ref, atol=5e-2, rtol=5e-2), "mismatch vs reference"

    print("KERNEL_OK")
</pallas_src>

<mosaic_0001>
module attributes {stable_mosaic.version = 11 : i64} {
  func.func @_gin_kernel(%arg0: i32, %arg1: memref<16x8xbf16, #tpu.memory_space<vmem>>, %arg2: memref<2x16x16xbf16, #tpu.memory_space<vmem>>, %arg3: memref<4x8x64xbf16, #tpu.memory_space<vmem>>, %arg4: memref<1x32xf32, #tpu.memory_space<vmem>>, %arg5: memref<32x8xbf16, #tpu.memory_space<vmem>>, %arg6: memref<1x8xf32, #tpu.memory_space<vmem>>, %arg7: memref<32x8xf32, #tpu.memory_space<vmem>>) attributes {dimension_semantics = [#tpu.dimension_semantics<arbitrary>], iteration_bounds = array<i64: 1>, scalar_prefetch = 0 : i64, scratch_operands = 0 : i64, tpu.core_type = #tpu.core_type<tc>, window_params = [{pipeline_mode = #tpu.pipeline_mode<synchronous>, transform_indices = @transform_0, window_bounds = array<i64: 16, 8>}, {pipeline_mode = #tpu.pipeline_mode<synchronous>, transform_indices = @transform_1, window_bounds = array<i64: 2, 16, 16>}, {pipeline_mode = #tpu.pipeline_mode<synchronous>, transform_indices = @transform_2, window_bounds = array<i64: 4, 8, 64>}, {pipeline_mode = #tpu.pipeline_mode<synchronous>, transform_indices = @transform_3, window_bounds = array<i64: 1, 32>}, {pipeline_mode = #tpu.pipeline_mode<synchronous>, transform_indices = @transform_4, window_bounds = array<i64: 32, 8>}, {pipeline_mode = #tpu.pipeline_mode<synchronous>, transform_indices = @transform_5, window_bounds = array<i64: 1, 8>}, {pipeline_mode = #tpu.pipeline_mode<synchronous>, transform_indices = @transform_6, window_bounds = array<i64: 32, 8>}]} {
    %c0 = arith.constant 0 : index
    %c0_0 = arith.constant 0 : index
    %0 = vector.load %arg1[%c0, %c0_0] : memref<16x8xbf16, #tpu.memory_space<vmem>>, vector<16x8xbf16>
    %c0_1 = arith.constant 0 : index
    %c0_2 = arith.constant 0 : index
    %c0_3 = arith.constant 0 : index
    %1 = vector.load %arg2[%c0_1, %c0_2, %c0_3] : memref<2x16x16xbf16, #tpu.memory_space<vmem>>, vector<1x16x16xbf16>
    %2 = vector.shape_cast %1 : vector<1x16x16xbf16> to vector<16x16xbf16>
    %cst = arith.constant dense<0.000000e+00> : vector<16x8xf32>
    %3 = tpu.matmul %2, %0, %cst {dimension_numbers = #tpu.dot_dimension_numbers<[1], [0], [0], [1], [0, 0, 1, 1], [], []>} : vector<16x16xbf16>, vector<16x8xbf16>, vector<16x8xf32> -> vector<16x8xf32>
    %4 = arith.truncf %3 : vector<16x8xf32> to vector<16x8xbf16>
    %c0_4 = arith.constant 0 : index
    %c0_5 = arith.constant 0 : index
    %c0_6 = arith.constant 0 : index
    %5 = vector.load %arg3[%c0_4, %c0_5, %c0_6] : memref<4x8x64xbf16, #tpu.memory_space<vmem>>, vector<1x8x64xbf16>
    %6 = vector.shape_cast %5 : vector<1x8x64xbf16> to vector<8x64xbf16>
    %cst_7 = arith.constant dense<0.000000e+00> : vector<16x64xf32>
    %7 = tpu.matmul %4, %6, %cst_7 {dimension_numbers = #tpu.dot_dimension_numbers<[1], [0], [0], [1], [0, 0, 1, 1], [], []>} : vector<16x8xbf16>, vector<8x64xbf16>, vector<16x64xf32> -> vector<16x64xf32>
    %cst_8 = arith.constant dense<0.000000e+00> : vector<16x8xf32>
    %8 = tpu.matmul %2, %4, %cst_8 {dimension_numbers = #tpu.dot_dimension_numbers<[1], [0], [0], [1], [0, 0, 1, 1], [], []>} : vector<16x16xbf16>, vector<16x8xbf16>, vector<16x8xf32> -> vector<16x8xf32>
    %9 = arith.truncf %8 : vector<16x8xf32> to vector<16x8xbf16>
    %c1 = arith.constant 1 : index
    %c0_9 = arith.constant 0 : index
    %c0_10 = arith.constant 0 : index
    %10 = vector.load %arg3[%c1, %c0_9, %c0_10] : memref<4x8x64xbf16, #tpu.memory_space<vmem>>, vector<1x8x64xbf16>
    %11 = vector.shape_cast %10 : vector<1x8x64xbf16> to vector<8x64xbf16>
    %cst_11 = arith.constant dense<0.000000e+00> : vector<16x64xf32>
    %12 = tpu.matmul %9, %11, %cst_11 {dimension_numbers = #tpu.dot_dimension_numbers<[1], [0], [0], [1], [0, 0, 1, 1], [], []>} : vector<16x8xbf16>, vector<8x64xbf16>, vector<16x64xf32> -> vector<16x64xf32>
    %13 = arith.addf %7, %12 : vector<16x64xf32>
    %c1_12 = arith.constant 1 : index
    %c0_13 = arith.constant 0 : index
    %c0_14 = arith.constant 0 : index
    %14 = vector.load %arg2[%c1_12, %c0_13, %c0_14] : memref<2x16x16xbf16, #tpu.memory_space<vmem>>, vector<1x16x16xbf16>
    %15 = vector.shape_cast %14 : vector<1x16x16xbf16> to vector<16x16xbf16>
    %cst_15 = arith.constant dense<0.000000e+00> : vector<16x8xf32>
    %16 = tpu.matmul %15, %0, %cst_15 {dimension_numbers = #tpu.dot_dimension_numbers<[1], [0], [0], [1], [0, 0, 1, 1], [], []>} : vector<16x16xbf16>, vector<16x8xbf16>, vector<16x8xf32> -> vector<16x8xf32>
    %17 = arith.truncf %16 : vector<16x8xf32> to vector<16x8xbf16>
    %c2 = arith.constant 2 : index
    %c0_16 = arith.constant 0 : index
    %c0_17 = arith.constant 0 : index
    %18 = vector.load %arg3[%c2, %c0_16, %c0_17] : memref<4x8x64xbf16, #tpu.memory_space<vmem>>, vector<1x8x64xbf16>
    %19 = vector.shape_cast %18 : vector<1x8x64xbf16> to vector<8x64xbf16>
    %cst_18 = arith.constant dense<0.000000e+00> : vector<16x64xf32>
    %20 = tpu.matmul %17, %19, %cst_18 {dimension_numbers = #tpu.dot_dimension_numbers<[1], [0], [0], [1], [0, 0, 1, 1], [], []>} : vector<16x8xbf16>, vector<8x64xbf16>, vector<16x64xf32> -> vector<16x64xf32>
    %21 = arith.addf %13, %20 : vector<16x64xf32>
    %cst_19 = arith.constant dense<0.000000e+00> : vector<16x8xf32>
    %22 = tpu.matmul %15, %17, %cst_19 {dimension_numbers = #tpu.dot_dimension_numbers<[1], [0], [0], [1], [0, 0, 1, 1], [], []>} : vector<16x16xbf16>, vector<16x8xbf16>, vector<16x8xf32> -> vector<16x8xf32>
    %23 = arith.truncf %22 : vector<16x8xf32> to vector<16x8xbf16>
    %c3 = arith.constant 3 : index
    %c0_20 = arith.constant 0 : index
    %c0_21 = arith.constant 0 : index
    %24 = vector.load %arg3[%c3, %c0_20, %c0_21] : memref<4x8x64xbf16, #tpu.memory_space<vmem>>, vector<1x8x64xbf16>
    %25 = vector.shape_cast %24 : vector<1x8x64xbf16> to vector<8x64xbf16>
    %cst_22 = arith.constant dense<0.000000e+00> : vector<16x64xf32>
    %26 = tpu.matmul %23, %25, %cst_22 {dimension_numbers = #tpu.dot_dimension_numbers<[1], [0], [0], [1], [0, 0, 1, 1], [], []>} : vector<16x8xbf16>, vector<8x64xbf16>, vector<16x64xf32> -> vector<16x64xf32>
    %27 = arith.addf %21, %26 : vector<16x64xf32>
    %c0_23 = arith.constant 0 : index
    %c0_24 = arith.constant 0 : index
    %28 = vector.load %arg4[%c0_23, %c0_24] : memref<1x32xf32, #tpu.memory_space<vmem>>, vector<1x32xf32>
    %c0_25 = arith.constant 0 : index
    %c0_26 = arith.constant 0 : index
    %29 = vector.load %arg5[%c0_25, %c0_26] : memref<32x8xbf16, #tpu.memory_space<vmem>>, vector<32x8xbf16>
    %c0_27 = arith.constant 0 : index
    %c0_28 = arith.constant 0 : index
    %30 = vector.load %arg6[%c0_27, %c0_28] : memref<1x8xf32, #tpu.memory_space<vmem>>, vector<1x8xf32>
    %31 = vector.extract_strided_slice %27 {offsets = [0, 0], sizes = [16, 32], strides = [1, 1]} : vector<16x64xf32> to vector<16x32xf32>
    %32 = vector.broadcast %28 : vector<1x32xf32> to vector<16x32xf32>
    %33 = arith.addf %31, %32 : vector<16x32xf32>
    %cst_29 = arith.constant dense<0.000000e+00> : vector<16xf32>
    %34 = vector.multi_reduction <add>, %33, %cst_29 [1] : vector<16x32xf32> to vector<16xf32>
    %35 = vector.shape_cast %34 : vector<16xf32> to vector<16x1xf32>
    %cst_30 = arith.constant 3.200000e+01 : f32
    %36 = vector.broadcast %cst_30 : f32 to vector<16x1xf32>
    %37 = arith.divf %35, %36 : vector<16x1xf32>
    %38 = vector.broadcast %37 : vector<16x1xf32> to vector<16x32xf32>
    %39 = arith.subf %33, %38 : vector<16x32xf32>
    %40 = arith.mulf %39, %39 : vector<16x32xf32>
    %cst_31 = arith.constant dense<0.000000e+00> : vector<16xf32>
    %41 = vector.multi_reduction <add>, %40, %cst_31 [1] : vector<16x32xf32> to vector<16xf32>
    %42 = vector.shape_cast %41 : vector<16xf32> to vector<16x1xf32>
    %cst_32 = arith.constant 3.200000e+01 : f32
    %43 = vector.broadcast %cst_32 : f32 to vector<16x1xf32>
    %44 = arith.divf %42, %43 : vector<16x1xf32>
    %45 = vector.broadcast %37 : vector<16x1xf32> to vector<16x32xf32>
    %46 = arith.subf %33, %45 : vector<16x32xf32>
    %cst_33 = arith.constant 9.99999993E-9 : f32
    %47 = vector.broadcast %cst_33 : f32 to vector<16x1xf32>
    %48 = arith.addf %44, %47 : vector<16x1xf32>
    %49 = math.rsqrt %48 : vector<16x1xf32>
    %50 = vector.broadcast %49 : vector<16x1xf32> to vector<16x32xf32>
    %51 = arith.mulf %46, %50 : vector<16x32xf32>
    %cst_34 = arith.constant 0.000000e+00 : f32
    %52 = vector.broadcast %cst_34 : f32 to vector<16x32xf32>
    %53 = arith.maximumf %51, %52 : vector<16x32xf32>
    %54 = arith.truncf %53 : vector<16x32xf32> to vector<16x32xbf16>
    %cst_35 = arith.constant dense<0.000000e+00> : vector<16x8xf32>
    %55 = tpu.matmul %54, %29, %cst_35 {dimension_numbers = #tpu.dot_dimension_numbers<[1], [0], [0], [1], [0, 0, 1, 1], [], []>} : vector<16x32xbf16>, vector<32x8xbf16>, vector<16x8xf32> -> vector<16x8xf32>
    %56 = vector.broadcast %30 : vector<1x8xf32> to vector<16x8xf32>
    %57 = arith.addf %55, %56 : vector<16x8xf32>
    %c0_36 = arith.constant 0 : index
    %c0_37 = arith.constant 0 : index
    %58 = vector.load %arg7[%c0_36, %c0_37] : memref<32x8xf32, #tpu.memory_space<vmem>>, vector<16x8xf32>
    tpu.vector_store %arg7[%c0_36, %c0_37], %57 {strides = array<i32>} : memref<32x8xf32, #tpu.memory_space<vmem>>, vector<16x8xf32>,
    %59 = vector.extract_strided_slice %27 {offsets = [0, 32], sizes = [16, 32], strides = [1, 1]} : vector<16x64xf32> to vector<16x32xf32>
    %60 = vector.broadcast %28 : vector<1x32xf32> to vector<16x32xf32>
    %61 = arith.addf %59, %60 : vector<16x32xf32>
    %cst_38 = arith.constant dense<0.000000e+00> : vector<16xf32>
    %62 = vector.multi_reduction <add>, %61, %cst_38 [1] : vector<16x32xf32> to vector<16xf32>
    %63 = vector.shape_cast %62 : vector<16xf32> to vector<16x1xf32>
    %cst_39 = arith.constant 3.200000e+01 : f32
    %64 = vector.broadcast %cst_39 : f32 to vector<16x1xf32>
    %65 = arith.divf %63, %64 : vector<16x1xf32>
    %66 = vector.broadcast %65 : vector<16x1xf32> to vector<16x32xf32>
    %67 = arith.subf %61, %66 : vector<16x32xf32>
    %68 = arith.mulf %67, %67 : vector<16x32xf32>
    %cst_40 = arith.constant dense<0.000000e+00> : vector<16xf32>
    %69 = vector.multi_reduction <add>, %68, %cst_40 [1] : vector<16x32xf32> to vector<16xf32>
    %70 = vector.shape_cast %69 : vector<16xf32> to vector<16x1xf32>
    %cst_41 = arith.constant 3.200000e+01 : f32
    %71 = vector.broadcast %cst_41 : f32 to vector<16x1xf32>
    %72 = arith.divf %70, %71 : vector<16x1xf32>
    %73 = vector.broadcast %65 : vector<16x1xf32> to vector<16x32xf32>
    %74 = arith.subf %61, %73 : vector<16x32xf32>
    %cst_42 = arith.constant 9.99999993E-9 : f32
    %75 = vector.broadcast %cst_42 : f32 to vector<16x1xf32>
    %76 = arith.addf %72, %75 : vector<16x1xf32>
    %77 = math.rsqrt %76 : vector<16x1xf32>
    %78 = vector.broadcast %77 : vector<16x1xf32> to vector<16x32xf32>
    %79 = arith.mulf %74, %78 : vector<16x32xf32>
    %cst_43 = arith.constant 0.000000e+00 : f32
    %80 = vector.broadcast %cst_43 : f32 to vector<16x32xf32>
    %81 = arith.maximumf %79, %80 : vector<16x32xf32>
    %82 = arith.truncf %81 : vector<16x32xf32> to vector<16x32xbf16>
    %cst_44 = arith.constant dense<0.000000e+00> : vector<16x8xf32>
    %83 = tpu.matmul %82, %29, %cst_44 {dimension_numbers = #tpu.dot_dimension_numbers<[1], [0], [0], [1], [0, 0, 1, 1], [], []>} : vector<16x32xbf16>, vector<32x8xbf16>, vector<16x8xf32> -> vector<16x8xf32>
    %84 = vector.broadcast %30 : vector<1x8xf32> to vector<16x8xf32>
    %85 = arith.addf %83, %84 : vector<16x8xf32>
    %c16 = arith.constant 16 : index
    %c0_45 = arith.constant 0 : index
    %86 = vector.load %arg7[%c16, %c0_45] : memref<32x8xf32, #tpu.memory_space<vmem>>, vector<16x8xf32>
    tpu.vector_store %arg7[%c16, %c0_45], %85 {strides = array<i32>} : memref<32x8xf32, #tpu.memory_space<vmem>>, vector<16x8xf32>,
    return
  }
  func.func @transform_0(%arg0: i32) -> (i32, i32) {
    %c0_i32 = arith.constant 0 : i32
    %c0_i32_0 = arith.constant 0 : i32
    %c0_i32_1 = arith.constant 0 : i32
    return %c0_i32, %c0_i32_0 : i32, i32
  }
  func.func @transform_1(%arg0: i32) -> (i32, i32, i32) {
    %c0_i32 = arith.constant 0 : i32
    %c0_i32_0 = arith.constant 0 : i32
    %c0_i32_1 = arith.constant 0 : i32
    %c0_i32_2 = arith.constant 0 : i32
    return %c0_i32, %c0_i32_0, %c0_i32_1 : i32, i32, i32
  }
  func.func @transform_2(%arg0: i32) -> (i32, i32, i32) {
    %c0_i32 = arith.constant 0 : i32
    %c0_i32_0 = arith.constant 0 : i32
    %c0_i32_1 = arith.constant 0 : i32
    %c0_i32_2 = arith.constant 0 : i32
    return %c0_i32, %c0_i32_0, %c0_i32_1 : i32, i32, i32
  }
  func.func @transform_3(%arg0: i32) -> (i32, i32) {
    %c0_i32 = arith.constant 0 : i32
    %c0_i32_0 = arith.constant 0 : i32
    %c0_i32_1 = arith.constant 0 : i32
    return %c0_i32, %c0_i32_0 : i32, i32
  }
  func.func @transform_4(%arg0: i32) -> (i32, i32) {
    %c0_i32 = arith.constant 0 : i32
    %c0_i32_0 = arith.constant 0 : i32
    %c0_i32_1 = arith.constant 0 : i32
    return %c0_i32, %c0_i32_0 : i32, i32
  }
  func.func @transform_5(%arg0: i32) -> (i32, i32) {
    %c0_i32 = arith.constant 0 : i32
    %c0_i32_0 = arith.constant 0 : i32
    %c0_i32_1 = arith.constant 0 : i32
    return %c0_i32, %c0_i32_0 : i32, i32
  }
  func.func @transform_6(%arg0: i32) -> (i32, i32) {
    %c0_i32 = arith.constant 0 : i32
    %c0_i32_0 = arith.constant 0 : i32
    %c0_i32_1 = arith.constant 0 : i32
    return %c0_i32, %c0_i32_0 : i32, i32
  }
}

</mosaic_0001>

<llo_original>
// kernel: tpu_custom_call.1
$region0: #{tpu_custom_call.1}
  #allocation0 [shape = 'u32[]', space=smem, size = 0x4, offset = 0x4, fixed_abs, tag = 'smem constant byte address 0x4 - core index']
  #allocation1 [shape = 'u32[144,128]{1,0:T(1,128)}', space=vmem, size = 0x12000, scoped, tag = 'internal scratch']
  %s0 = inlined_call_operand.vmem [shape: bf16[16,8], index: 0, kind: input, shape index: {}]
  %s1 = inlined_call_operand.vmem [shape: bf16[2,16,16], index: 1, kind: input, shape index: {}]
  %s2 = inlined_call_operand.vmem [shape: bf16[4,8,64], index: 2, kind: input, shape index: {}]
  %s3 = inlined_call_operand.vmem [shape: f32[1,32], index: 3, kind: input, shape index: {}]
  %s4 = inlined_call_operand.vmem [shape: bf16[32,8], index: 4, kind: input, shape index: {}]
  %s5 = inlined_call_operand.vmem [shape: f32[1,8], index: 5, kind: input, shape index: {}]
  %s6 = inlined_call_operand.vmem [shape: f32[32,8], index: 6, kind: output, shape index: {}]
  %s7 = sld [smem:[#allocation0]]
  $region34: #{tpu_custom_call.1} parent=0
    _
  %s9 = ssub.s32 1, %s7
  %s10 = scalar_select 0, %s9, %s7
  // Predicated region
  $region2: #{tpu_custom_call.1} parent=0 // pred_check
    _
  $region3: #{tpu_custom_call.1} parent=0 // pred_check_branch
    %12 = sbr.rel (0) target = $region5
  $region4: #{tpu_custom_call.1} parent=0 // pred_region
    _
  $region5: #{tpu_custom_call.1} parent=0 // pred_fallthru
    _
  // Predicated region
  $region6: #{tpu_custom_call.1} parent=0 // pred_check
    _
  $region7: #{tpu_custom_call.1} parent=0 // pred_check_branch
    %14 = sbr.rel (0) target = $region9
  $region8: #{tpu_custom_call.1} parent=0 // pred_region
    _
  $region9: #{tpu_custom_call.1} parent=0 // pred_fallthru
    _
  // Predicated region
  $region10: #{tpu_custom_call.1} parent=0 // pred_check
    _
  $region11: #{tpu_custom_call.1} parent=0 // pred_check_branch
    %16 = sbr.rel (0) target = $region13
  $region12: #{tpu_custom_call.1} parent=0 // pred_region
    _
  $region13: #{tpu_custom_call.1} parent=0 // pred_fallthru
    _
  // Predicated region
  $region14: #{tpu_custom_call.1} parent=0 // pred_check
    _
  $region15: #{tpu_custom_call.1} parent=0 // pred_check_branch
    %18 = sbr.rel (0) target = $region17
  $region16: #{tpu_custom_call.1} parent=0 // pred_region
    _
  $region17: #{tpu_custom_call.1} parent=0 // pred_fallthru
    _
  // Predicated region
  $region18: #{tpu_custom_call.1} parent=0 // pred_check
    _
  $region19: #{tpu_custom_call.1} parent=0 // pred_check_branch
    %20 = sbr.rel (0) target = $region21
  $region20: #{tpu_custom_call.1} parent=0 // pred_region
    _
  $region21: #{tpu_custom_call.1} parent=0 // pred_fallthru
    _
  // Predicated region
  $region22: #{tpu_custom_call.1} parent=0 // pred_check
    _
  $region23: #{tpu_custom_call.1} parent=0 // pred_check_branch
    %22 = sbr.rel (0) target = $region25
  $region24: #{tpu_custom_call.1} parent=0 // pred_region
    _
  $region25: #{tpu_custom_call.1} parent=0 // pred_fallthru
    _
  %v24 = vld [vmem:[%s0] sm:$0xf]
  %v25 = vld [vmem:[%s0 + $0x4] sm:$0xf]
  %v26 = vld [vmem:[%s1] sm:$0xf]
  %v27 = vld [vmem:[%s1 + $0x4] sm:$0xf]
  %v30 = vunpack.c.l.b16 %v26
  %v31 = vunpack.c.l.b16 %v27
  %v32 = vpack.c.b16 %v31, %v30
  %v35 = vunpack.c.l.b16 %v24
  %v36 = vunpack.c.l.b16 %v25
  %v37 = vpack.c.b16 %v36, %v35
  %vm39 = vcmask 130048
  %v41 = vsel %vm39, %v32, 0
  %43 = vmatprep.subr.bf16.mxu0 0
  %44 = vmatpush1.bf16.msra.mxu0 0
  %45 = vmatprep.subr.bf16.mxu0 0
  %46 = vmatpush1.bf16.msra.mxu0 0
  %47 = vmatprep.subr.bf16.mxu0 0
  %48 = vmatpush1.bf16.msra.mxu0 0
  %49 = vmatprep.subr.bf16.mxu0 0
  %50 = vmatpush1.bf16.msra.mxu0 0
  %51 = vmatprep.subr.bf16.mxu0 0
  %52 = vmatpush1.bf16.msra.mxu0 0
  %53 = vmatprep.subr.bf16.mxu0 0
  %54 = vmatpush1.bf16.msra.mxu0 0
  %55 = vmatprep.subr.bf16.mxu0 0
  %56 = vmatpush1.bf16.msra.mxu0 0
  %57 = vmatprep.subr.bf16.mxu0 0
  %58 = vmatpush1.bf16.msra.mxu0 %v37
  %59 = vmatprep.subr.bf16.mxu0 0
  %60 = vmatpush2.bf16.msra.mxu0 0
  %61 = vmatprep.subr.bf16.mxu0 0
  %62 = vmatpush2.bf16.msra.mxu0 0
  %63 = vmatprep.subr.bf16.mxu0 0
  %64 = vmatpush2.bf16.msra.mxu0 0
  %65 = vmatprep.subr.bf16.mxu0 0
  %66 = vmatpush2.bf16.msra.mxu0 0
  %67 = vmatprep.subr.bf16.mxu0 0
  %68 = vmatpush2.bf16.msra.mxu0 0
  %69 = vmatprep.subr.bf16.mxu0 0
  %70 = vmatpush2.bf16.msra.mxu0 0
  %71 = vmatprep.subr.bf16.mxu0 0
  %72 = vmatpush2.bf16.msra.mxu0 0
  %73 = vmatprep.subr.bf16.mxu0 0
  %74 = vmatpush2.bf16.msra.mxu0 0
  %75 = vmatprep.mubr.bf16.mxu0 0
  %76 = vmatmul.mubr.bf16.gmra.mxu0 %v41
  %v77 = vpop.f32.mrf.mxu0
  %v78 = vadd.f32 0.0, %v77
  %v79 = vpop.f32.mrf.mxu0
  %v80 = vpop.f32.mrf.mxu0
  %v81 = vadd.f32 0.0, %v80
  %v82 = vpop.f32.mrf.mxu0
  %83 = vdwg.mxu0
  %v84 = vpack.c.bf16 %v81, %v78
  %v85 = vld [vmem:[%s2] sm:$0xf]
  %86 = vmatprep.subr.bf16.mxu0 0
  %87 = vmatpush1.bf16.msra.mxu0 0
  %88 = vmatprep.subr.bf16.mxu0 0
  %89 = vmatpush1.bf16.msra.mxu0 0
  %90 = vmatprep.subr.bf16.mxu0 0
  %91 = vmatpush1.bf16.msra.mxu0 0
  %92 = vmatprep.subr.bf16.mxu0 0
  %93 = vmatpush1.bf16.msra.mxu0 0
  %94 = vmatprep.subr.bf16.mxu0 0
  %95 = vmatpush1.bf16.msra.mxu0 0
  %96 = vmatprep.subr.bf16.mxu0 0
  %97 = vmatpush1.bf16.msra.mxu0 0
  %98 = vmatprep.subr.bf16.mxu0 0
  %99 = vmatpush1.bf16.msra.mxu0 0
  %100 = vmatprep.subr.bf16.mxu0 0
  %101 = vmatpush1.bf16.msra.mxu0 %v84
  %102 = vmatprep.subr.bf16.mxu0 0
  %103 = vmatpush2.bf16.msra.mxu0 0
  %104 = vmatprep.subr.bf16.mxu0 0
  %105 = vmatpush2.bf16.msra.mxu0 0
  %106 = vmatprep.subr.bf16.mxu0 0
  %107 = vmatpush2.bf16.msra.mxu0 0
  %108 = vmatprep.subr.bf16.mxu0 0
  %109 = vmatpush2.bf16.msra.mxu0 0
  %110 = vmatprep.subr.bf16.mxu0 0
  %111 = vmatpush2.bf16.msra.mxu0 0
  %112 = vmatprep.subr.bf16.mxu0 0
  %113 = vmatpush2.bf16.msra.mxu0 0
  %114 = vmatprep.subr.bf16.mxu0 0
  %115 = vmatpush2.bf16.msra.mxu0 0
  %116 = vmatprep.subr.bf16.mxu0 0
  %117 = vmatpush2.bf16.msra.mxu0 0
  %118 = vmatprep.mubr.bf16.mxu0 0
  %119 = vmatmul.mubr.bf16.gmra.mxu0 %v41
  %v120 = vpop.f32.mrf.mxu0
  %v121 = vadd.f32 0.0, %v120
  %v122 = vpop.f32.mrf.mxu0
  %v123 = vpop.f32.mrf.mxu0
  %v124 = vadd.f32 0.0, %v123
  %v125 = vpop.f32.mrf.mxu0
  %126 = vdwg.mxu0
  %v127 = vpack.c.bf16 %v124, %v121
  %s128 = scalar_lea.vmem %s2, 4
  %v129 = vld [vmem:[%s128] sm:$0xf]
  %vm130 = vcmask 64512
  %v132 = vsel %vm130, %v127, 0
  %vm134 = vcmask 1043456
  %v136 = vsel %vm134, %v129, 0
  %138 = vmatprep.subr.bf16.mxu0 0
  %139 = vmatpush1.bf16.msra.mxu0 0
  %140 = vmatprep.subr.bf16.mxu0 0
  %141 = vmatpush1.bf16.msra.mxu0 0
  %142 = vmatprep.subr.bf16.mxu0 0
  %143 = vmatpush1.bf16.msra.mxu0 0
  %144 = vmatprep.subr.bf16.mxu0 0
  %145 = vmatpush1.bf16.msra.mxu0 0
  %146 = vmatprep.subr.bf16.mxu0 0
  %147 = vmatpush1.bf16.msra.mxu0 0
  %148 = vmatprep.subr.bf16.mxu0 0
  %149 = vmatpush1.bf16.msra.mxu0 0
  %150 = vmatprep.subr.bf16.mxu0 0
  %151 = vmatpush1.bf16.msra.mxu0 0
  %152 = vmatprep.subr.bf16.mxu0 0
  %153 = vmatpush1.bf16.msra.mxu0 %v136
  %154 = vmatprep.subr.bf16.mxu0 0
  %155 = vmatpush2.bf16.msra.mxu0 0
  %156 = vmatprep.subr.bf16.mxu0 0
  %157 = vmatpush2.bf16.msra.mxu0 0
  %158 = vmatprep.subr.bf16.mxu0 0
  %159 = vmatpush2.bf16.msra.mxu0 0
  %160 = vmatprep.subr.bf16.mxu0 0
  %161 = vmatpush2.bf16.msra.mxu0 0
  %162 = vmatprep.subr.bf16.mxu0 0
  %163 = vmatpush2.bf16.msra.mxu0 0
  %164 = vmatprep.subr.bf16.mxu0 0
  %165 = vmatpush2.bf16.msra.mxu0 0
  %166 = vmatprep.subr.bf16.mxu0 0
  %167 = vmatpush2.bf16.msra.mxu0 0
  %168 = vmatprep.subr.bf16.mxu0 0
  %169 = vmatpush2.bf16.msra.mxu0 0
  %170 = vmatprep.mubr.bf16.mxu0 0
  %171 = vmatmul.mubr.bf16.gmra.mxu0 %v132
  %v172 = vpop.f32.mrf.mxu0
  %v173 = vadd.f32 0.0, %v172
  %v174 = vpop.f32.mrf.mxu0
  %v175 = vpop.f32.mrf.mxu0
  %v176 = vadd.f32 0.0, %v175
  %v177 = vpop.f32.mrf.mxu0
  %178 = vdwg.mxu0
  %v180 = vsel %vm130, %v84, 0
  %v183 = vsel %vm134, %v85, 0
  %185 = vmatprep.subr.bf16.mxu0 0
  %186 = vmatpush1.bf16.msra.mxu0 0
  %187 = vmatprep.subr.bf16.mxu0 0
  %188 = vmatpush1.bf16.msra.mxu0 0
  %189 = vmatprep.subr.bf16.mxu0 0
  %190 = vmatpush1.bf16.msra.mxu0 0
  %191 = vmatprep.subr.bf16.mxu0 0
  %192 = vmatpush1.bf16.msra.mxu0 0
  %193 = vmatprep.subr.bf16.mxu0 0
  %194 = vmatpush1.bf16.msra.mxu0 0
  %195 = vmatprep.subr.bf16.mxu0 0
  %196 = vmatpush1.bf16.msra.mxu0 0
  %197 = vmatprep.subr.bf16.mxu0 0
  %198 = vmatpush1.bf16.msra.mxu0 0
  %199 = vmatprep.subr.bf16.mxu0 0
  %200 = vmatpush1.bf16.msra.mxu0 %v183
  %201 = vmatprep.subr.bf16.mxu0 0
  %202 = vmatpush2.bf16.msra.mxu0 0
  %203 = vmatprep.subr.bf16.mxu0 0
  %204 = vmatpush2.bf16.msra.mxu0 0
  %205 = vmatprep.subr.bf16.mxu0 0
  %206 = vmatpush2.bf16.msra.mxu0 0
  %207 = vmatprep.subr.bf16.mxu0 0
  %208 = vmatpush2.bf16.msra.mxu0 0
  %209 = vmatprep.subr.bf16.mxu0 0
  %210 = vmatpush2.bf16.msra.mxu0 0
  %211 = vmatprep.subr.bf16.mxu0 0
  %212 = vmatpush2.bf16.msra.mxu0 0
  %213 = vmatprep.subr.bf16.mxu0 0
  %214 = vmatpush2.bf16.msra.mxu0 0
  %215 = vmatprep.subr.bf16.mxu0 0
  %216 = vmatpush2.bf16.msra.mxu0 0
  %217 = vmatprep.mubr.bf16.mxu0 0
  %218 = vmatmul.mubr.bf16.gmra.mxu0 %v180
  %v219 = vpop.f32.mrf.mxu0
  %v220 = vadd.f32 %v173, %v219
  %v221 = vpop.f32.mrf.mxu0
  %v222 = vpop.f32.mrf.mxu0
  %v223 = vadd.f32 %v176, %v222
  %v224 = vpop.f32.mrf.mxu0
  %225 = vdwg.mxu0
  %s226 = scalar_lea.vmem %s1, 8
  %v227 = vld [vmem:[%s226] sm:$0xf]
  %v228 = vld [vmem:[%s226 + $0x4] sm:$0xf]
  %v231 = vunpack.c.l.b16 %v227
  %v232 = vunpack.c.l.b16 %v228
  %v233 = vpack.c.b16 %v232, %v231
  %v235 = vsel %vm39, %v233, 0
  %237 = vmatprep.subr.bf16.mxu0 0
  %238 = vmatpush1.bf16.msra.mxu0 0
  %239 = vmatprep.subr.bf16.mxu0 0
  %240 = vmatpush1.bf16.msra.mxu0 0
  %241 = vmatprep.subr.bf16.mxu0 0
  %242 = vmatpush1.bf16.msra.mxu0 0
  %243 = vmatprep.subr.bf16.mxu0 0
  %244 = vmatpush1.bf16.msra.mxu0 0
  %245 = vmatprep.subr.bf16.mxu0 0
  %246 = vmatpush1.bf16.msra.mxu0 0
  %247 = vmatprep.subr.bf16.mxu0 0
  %248 = vmatpush1.bf16.msra.mxu0 0
  %249 = vmatprep.subr.bf16.mxu0 0
  %250 = vmatpush1.bf16.msra.mxu0 0
  %251 = vmatprep.subr.bf16.mxu0 0
  %252 = vmatpush1.bf16.msra.mxu0 %v37
  %253 = vmatprep.subr.bf16.mxu0 0
  %254 = vmatpush2.bf16.msra.mxu0 0
  %255 = vmatprep.subr.bf16.mxu0 0
  %256 = vmatpush2.bf16.msra.mxu0 0
  %257 = vmatprep.subr.bf16.mxu0 0
  %258 = vmatpush2.bf16.msra.mxu0 0
  %259 = vmatprep.subr.bf16.mxu0 0
  %260 = vmatpush2.bf16.msra.mxu0 0
  %261 = vmatprep.subr.bf16.mxu0 0
  %262 = vmatpush2.bf16.msra.mxu0 0
  %263 = vmatprep.subr.bf16.mxu0 0
  %264 = vmatpush2.bf16.msra.mxu0 0
  %265 = vmatprep.subr.bf16.mxu0 0
  %266 = vmatpush2.bf16.msra.mxu0 0
  %267 = vmatprep.subr.bf16.mxu0 0
  %268 = vmatpush2.bf16.msra.mxu0 0
  %269 = vmatprep.mubr.bf16.mxu0 0
  %270 = vmatmul.mubr.bf16.gmra.mxu0 %v235
  %v271 = vpop.f32.mrf.mxu0
  %v272 = vadd.f32 0.0, %v271
  %v273 = vpop.f32.mrf.mxu0
  %v274 = vpop.f32.mrf.mxu0
  %v275 = vadd.f32 0.0, %v274
  %v276 = vpop.f32.mrf.mxu0
  %277 = vdwg.mxu0
  %v278 = vpack.c.bf16 %v275, %v272
  %s279 = scalar_lea.vmem %s2, 8
  %v280 = vld [vmem:[%s279] sm:$0xf]
  %v282 = vsel %vm130, %v278, 0
  %v285 = vsel %vm134, %v280, 0
  %287 = vmatprep.subr.bf16.mxu0 0
  %288 = vmatpush1.bf16.msra.mxu0 0
  %289 = vmatprep.subr.bf16.mxu0 0
  %290 = vmatpush1.bf16.msra.mxu0 0
  %291 = vmatprep.subr.bf16.mxu0 0
  %292 = vmatpush1.bf16.msra.mxu0 0
  %293 = vmatprep.subr.bf16.mxu0 0
  %294 = vmatpush1.bf16.msra.mxu0 0
  %295 = vmatprep.subr.bf16.mxu0 0
  %296 = vmatpush1.bf16.msra.mxu0 0
  %297 = vmatprep.subr.bf16.mxu0 0
  %298 = vmatpush1.bf16.msra.mxu0 0
  %299 = vmatprep.subr.bf16.mxu0 0
  %300 = vmatpush1.bf16.msra.mxu0 0
  %301 = vmatprep.subr.bf16.mxu0 0
  %302 = vmatpush1.bf16.msra.mxu0 %v285
  %303 = vmatprep.subr.bf16.mxu0 0
  %304 = vmatpush2.bf16.msra.mxu0 0
  %305 = vmatprep.subr.bf16.mxu0 0
  %306 = vmatpush2.bf16.msra.mxu0 0
  %307 = vmatprep.subr.bf16.mxu0 0
  %308 = vmatpush2.bf16.msra.mxu0 0
  %309 = vmatprep.subr.bf16.mxu0 0
  %310 = vmatpush2.bf16.msra.mxu0 0
  %311 = vmatprep.subr.bf16.mxu0 0
  %312 = vmatpush2.bf16.msra.mxu0 0
  %313 = vmatprep.subr.bf16.mxu0 0
  %314 = vmatpush2.bf16.msra.mxu0 0
  %315 = vmatprep.subr.bf16.mxu0 0
  %316 = vmatpush2.bf16.msra.mxu0 0
  %317 = vmatprep.subr.bf16.mxu0 0
  %318 = vmatpush2.bf16.msra.mxu0 0
  %319 = vmatprep.mubr.bf16.mxu0 0
  %320 = vmatmul.mubr.bf16.gmra.mxu0 %v282
  %v321 = vpop.f32.mrf.mxu0
  %v322 = vadd.f32 0.0, %v321
  %v323 = vpop.f32.mrf.mxu0
  %v324 = vpop.f32.mrf.mxu0
  %v325 = vadd.f32 0.0, %v324
  %v326 = vpop.f32.mrf.mxu0
  %327 = vdwg.mxu0
  %v328 = vadd.f32 %v220, %v322
  %v329 = vadd.f32 %v223, %v325
  %330 = vmatprep.subr.bf16.mxu0 0
  %331 = vmatpush1.bf16.msra.mxu0 0
  %332 = vmatprep.subr.bf16.mxu0 0
  %333 = vmatpush1.bf16.msra.mxu0 0
  %334 = vmatprep.subr.bf16.mxu0 0
  %335 = vmatpush1.bf16.msra.mxu0 0
  %336 = vmatprep.subr.bf16.mxu0 0
  %337 = vmatpush1.bf16.msra.mxu0 0
  %338 = vmatprep.subr.bf16.mxu0 0
  %339 = vmatpush1.bf16.msra.mxu0 0
  %340 = vmatprep.subr.bf16.mxu0 0
  %341 = vmatpush1.bf16.msra.mxu0 0
  %342 = vmatprep.subr.bf16.mxu0 0
  %343 = vmatpush1.bf16.msra.mxu0 0
  %344 = vmatprep.subr.bf16.mxu0 0
  %345 = vmatpush1.bf16.msra.mxu0 %v278
  %346 = vmatprep.subr.bf16.mxu0 0
  %347 = vmatpush2.bf16.msra.mxu0 0
  %348 = vmatprep.subr.bf16.mxu0 0
  %349 = vmatpush2.bf16.msra.mxu0 0
  %350 = vmatprep.subr.bf16.mxu0 0
  %351 = vmatpush2.bf16.msra.mxu0 0
  %352 = vmatprep.subr.bf16.mxu0 0
  %353 = vmatpush2.bf16.msra.mxu0 0
  %354 = vmatprep.subr.bf16.mxu0 0
  %355 = vmatpush2.bf16.msra.mxu0 0
  %356 = vmatprep.subr.bf16.mxu0 0
  %357 = vmatpush2.bf16.msra.mxu0 0
  %358 = vmatprep.subr.bf16.mxu0 0
  %359 = vmatpush2.bf16.msra.mxu0 0
  %360 = vmatprep.subr.bf16.mxu0 0
  %361 = vmatpush2.bf16.msra.mxu0 0
  %362 = vmatprep.mubr.bf16.mxu0 0
  %363 = vmatmul.mubr.bf16.gmra.mxu0 %v235
  %v364 = vpop.f32.mrf.mxu0
  %v365 = vadd.f32 0.0, %v364
  %v366 = vpop.f32.mrf.mxu0
  %v367 = vpop.f32.mrf.mxu0
  %v368 = vadd.f32 0.0, %v367
  %v369 = vpop.f32.mrf.mxu0
  %370 = vdwg.mxu0
  %v371 = vpack.c.bf16 %v368, %v365
  %s372 = scalar_lea.vmem %s2, 12
  %v373 = vld [vmem:[%s372] sm:$0xf]
  %v375 = vsel %vm130, %v371, 0
  %v378 = vsel %vm134, %v373, 0
  %380 = vmatprep.subr.bf16.mxu0 0
  %381 = vmatpush1.bf16.msra.mxu0 0
  %382 = vmatprep.subr.bf16.mxu0 0
  %383 = vmatpush1.bf16.msra.mxu0 0
  %384 = vmatprep.subr.bf16.mxu0 0
  %385 = vmatpush1.bf16.msra.mxu0 0
  %386 = vmatprep.subr.bf16.mxu0 0
  %387 = vmatpush1.bf16.msra.mxu0 0
  %388 = vmatprep.subr.bf16.mxu0 0
  %389 = vmatpush1.bf16.msra.mxu0 0
  %390 = vmatprep.subr.bf16.mxu0 0
  %391 = vmatpush1.bf16.msra.mxu0 0
  %392 = vmatprep.subr.bf16.mxu0 0
  %393 = vmatpush1.bf16.msra.mxu0 0
  %394 = vmatprep.subr.bf16.mxu0 0
  %395 = vmatpush1.bf16.msra.mxu0 %v378
  %396 = vmatprep.subr.bf16.mxu0 0
  %397 = vmatpush2.bf16.msra.mxu0 0
  %398 = vmatprep.subr.bf16.mxu0 0
  %399 = vmatpush2.bf16.msra.mxu0 0
  %400 = vmatprep.subr.bf16.mxu0 0
  %401 = vmatpush2.bf16.msra.mxu0 0
  %402 = vmatprep.subr.bf16.mxu0 0
  %403 = vmatpush2.bf16.msra.mxu0 0
  %404 = vmatprep.subr.bf16.mxu0 0
  %405 = vmatpush2.bf16.msra.mxu0 0
  %406 = vmatprep.subr.bf16.mxu0 0
  %407 = vmatpush2.bf16.msra.mxu0 0
  %408 = vmatprep.subr.bf16.mxu0 0
  %409 = vmatpush2.bf16.msra.mxu0 0
  %410 = vmatprep.subr.bf16.mxu0 0
  %411 = vmatpush2.bf16.msra.mxu0 0
  %412 = vmatprep.mubr.bf16.mxu0 0
  %413 = vmatmul.mubr.bf16.gmra.mxu0 %v375
  %v414 = vpop.f32.mrf.mxu0
  %v415 = vadd.f32 0.0, %v414
  %v416 = vpop.f32.mrf.mxu0
  %v417 = vpop.f32.mrf.mxu0
  %v418 = vadd.f32 0.0, %v417
  %v419 = vpop.f32.mrf.mxu0
  %420 = vdwg.mxu0
  %v421 = vadd.f32 %v328, %v415
  %v422 = vadd.f32 %v329, %v418
  %v423 = vld [vmem:[%s3] sm:$0x1]
  %v424 = vld [vmem:[%s4] sm:$0xf]
  %v425 = vld [vmem:[%s4 + $0x4] sm:$0xf]
  %v426 = vld [vmem:[%s4 + $0x8] sm:$0xf]
  %v427 = vld [vmem:[%s4 + $0xc] sm:$0xf]
  %v428 = vld [vmem:[%s5] sm:$0x1]
  %v430 = vlaneseq
  %v431 = vshrl.u32 %v430, 7
  %v432 = vsub.s32 0, %v431
  %v433 = vrot.slane %v423, %v432
  %v435 = vadd.f32 %v421, %v433
  %v436 = vadd.f32 %v422, %v433
  %vm437 = vcmask 261120
  %v438 = vsel %vm437, %v435, 0.0
  %439 = vadd.xlane.f32.xlu0 %v438
  %v440 = vpop.xlane.xlu0 %439
  %v441 = vsel %vm437, %v436, 0.0
  %442 = vadd.xlane.f32.xlu0 %v441
  %v443 = vpop.xlane.xlu0 %442
  %v444 = vrcp.pop 32.0
  %v445 = vmul.f32 %v440, %v444
  %v446 = vmul.f32 %v443, %v444
  %v447 = vsub.f32 %v435, %v445
  %v448 = vsub.f32 %v436, %v446
  %v449 = vmul.f32 %v447, %v447
  %v450 = vmul.f32 %v448, %v448
  %v451 = vsel %vm437, %v449, 0.0
  %452 = vadd.xlane.f32.xlu0 %v451
  %v453 = vpop.xlane.xlu0 %452
  %v454 = vsel %vm437, %v450, 0.0
  %455 = vadd.xlane.f32.xlu0 %v454
  %v456 = vpop.xlane.xlu0 %455
  %v457 = vmul.f32 %v453, %v444
  %v458 = vmul.f32 %v456, %v444
  %v459 = vadd.f32 %v457, 1e-08
  %v460 = vadd.f32 %v458, 1e-08
  %v461 = vrsqrt.pop %v459
  %v462 = vrsqrt.pop %v460
  %v463 = vmul.f32 %v447, %v461
  %v464 = vmul.f32 %v448, %v462
  %v465 = vmax.f32 %v463, 0.0
  %v466 = vmax.f32 %v464, 0.0
  %v467 = vpack.c.bf16 %v466, %v465
  %v469 = vlaneseq
  %v470 = vshrl.u32 %v469, 7
  %v471 = vsub.s32 0, %v470
  %v472 = vrot.slane %v428, %v471
  %v478 = vunpack.c.l.b16 %v424
  %v479 = vunpack.c.l.b16 %v425
  %v480 = vunpack.c.l.b16 %v426
  %v481 = vunpack.c.l.b16 %v427
  %v482 = vpack.c.b16 %v479, %v478
  %v483 = vpack.c.b16 %v481, %v480
  %v487 = vsel %vm437, %v467, 0
  %489 = vmatprep.subr.bf16.mxu0 0
  %490 = vmatpush1.bf16.msra.mxu0 0
  %491 = vmatprep.subr.bf16.mxu0 0
  %492 = vmatpush1.bf16.msra.mxu0 0
  %493 = vmatprep.subr.bf16.mxu0 0
  %494 = vmatpush1.bf16.msra.mxu0 0
  %495 = vmatprep.subr.bf16.mxu0 0
  %496 = vmatpush1.bf16.msra.mxu0 0
  %497 = vmatprep.subr.bf16.mxu0 0
  %498 = vmatpush1.bf16.msra.mxu0 0
  %499 = vmatprep.subr.bf16.mxu0 0
  %500 = vmatpush1.bf16.msra.mxu0 0
  %501 = vmatprep.subr.bf16.mxu0 0
  %502 = vmatpush1.bf16.msra.mxu0 %v483
  %503 = vmatprep.subr.bf16.mxu0 0
  %504 = vmatpush1.bf16.msra.mxu0 %v482
  %505 = vmatprep.subr.bf16.mxu0 0
  %506 = vmatpush2.bf16.msra.mxu0 0
  %507 = vmatprep.subr.bf16.mxu0 0
  %508 = vmatpush2.bf16.msra.mxu0 0
  %509 = vmatprep.subr.bf16.mxu0 0
  %510 = vmatpush2.bf16.msra.mxu0 0
  %511 = vmatprep.subr.bf16.mxu0 0
  %512 = vmatpush2.bf16.msra.mxu0 0
  %513 = vmatprep.subr.bf16.mxu0 0
  %514 = vmatpush2.bf16.msra.mxu0 0
  %515 = vmatprep.subr.bf16.mxu0 0
  %516 = vmatpush2.bf16.msra.mxu0 0
  %517 = vmatprep.subr.bf16.mxu0 0
  %518 = vmatpush2.bf16.msra.mxu0 0
  %519 = vmatprep.subr.bf16.mxu0 0
  %520 = vmatpush2.bf16.msra.mxu0 0
  %521 = vmatprep.mubr.bf16.mxu0 0
  %522 = vmatmul.mubr.bf16.gmra.mxu0 %v487
  %v523 = vpop.f32.mrf.mxu0
  %v524 = vadd.f32 %v472, %v523
  %v525 = vpop.f32.mrf.mxu0
  %v526 = vpop.f32.mrf.mxu0
  %v527 = vadd.f32 %v472, %v526
  %v528 = vpop.f32.mrf.mxu0
  %529 = vdwg.mxu0
  %530 = vst.msk [vmem:[%s6] sm:$0xff] %vm130, %v524
  %531 = vst.msk [vmem:[%s6 + $0x8] sm:$0xff] %vm130, %v527
  %532 = vrot.lane.b32.xlu0 %v433, 32
  %v533 = vpop.permute.xlu0 %532
  %v535 = vadd.f32 %v421, %v533
  %v536 = vadd.f32 %v422, %v533
  %539 = vrot.lane.b32.xlu0 %v535, 96
  %v540 = vpop.permute.xlu0 %539
  %541 = vrot.lane.b32.xlu0 %v536, 96
  %v542 = vpop.permute.xlu0 %541
  %v545 = vsel %vm437, %v540, 0.0
  %546 = vadd.xlane.f32.xlu0 %v545
  %v547 = vpop.xlane.xlu0 %546
  %v548 = vsel %vm437, %v542, 0.0
  %549 = vadd.xlane.f32.xlu0 %v548
  %v550 = vpop.xlane.xlu0 %549
  %v551 = vmul.f32 %v547, %v444
  %v552 = vmul.f32 %v550, %v444
  %v553 = vsub.f32 %v535, %v551
  %v554 = vsub.f32 %v536, %v552
  %v555 = vmul.f32 %v553, %v553
  %v556 = vmul.f32 %v554, %v554
  %559 = vrot.lane.b32.xlu0 %v555, 96
  %v560 = vpop.permute.xlu0 %559
  %561 = vrot.lane.b32.xlu0 %v556, 96
  %v562 = vpop.permute.xlu0 %561
  %v565 = vsel %vm437, %v560, 0.0
  %566 = vadd.xlane.f32.xlu0 %v565
  %v567 = vpop.xlane.xlu0 %566
  %v568 = vsel %vm437, %v562, 0.0
  %569 = vadd.xlane.f32.xlu0 %v568
  %v570 = vpop.xlane.xlu0 %569
  %v571 = vmul.f32 %v567, %v444
  %v572 = vmul.f32 %v570, %v444
  %v573 = vadd.f32 %v571, 1e-08
  %v574 = vadd.f32 %v572, 1e-08
  %v575 = vrsqrt.pop %v573
  %v576 = vrsqrt.pop %v574
  %v577 = vmul.f32 %v553, %v575
  %v578 = vmul.f32 %v554, %v576
  %v579 = vmax.f32 %v577, 0.0
  %v580 = vmax.f32 %v578, 0.0
  %v581 = vpack.c.bf16 %v580, %v579
  %583 = vrot.lane.b32.xlu0 %v581, 96
  %v584 = vpop.permute.xlu0 %583
  %v586 = vsel %vm437, %v584, 0
  %588 = vmatprep.subr.bf16.mxu0 0
  %589 = vmatpush1.bf16.msra.mxu0 0
  %590 = vmatprep.subr.bf16.mxu0 0
  %591 = vmatpush1.bf16.msra.mxu0 0
  %592 = vmatprep.subr.bf16.mxu0 0
  %593 = vmatpush1.bf16.msra.mxu0 0
  %594 = vmatprep.subr.bf16.mxu0 0
  %595 = vmatpush1.bf16.msra.mxu0 0
  %596 = vmatprep.subr.bf16.mxu0 0
  %597 = vmatpush1.bf16.msra.mxu0 0
  %598 = vmatprep.subr.bf16.mxu0 0
  %599 = vmatpush1.bf16.msra.mxu0 0
  %600 = vmatprep.subr.bf16.mxu0 0
  %601 = vmatpush1.bf16.msra.mxu0 %v483
  %602 = vmatprep.subr.bf16.mxu0 0
  %603 = vmatpush1.bf16.msra.mxu0 %v482
  %604 = vmatprep.subr.bf16.mxu0 0
  %605 = vmatpush2.bf16.msra.mxu0 0
  %606 = vmatprep.subr.bf16.mxu0 0
  %607 = vmatpush2.bf16.msra.mxu0 0
  %608 = vmatprep.subr.bf16.mxu0 0
  %609 = vmatpush2.bf16.msra.mxu0 0
  %610 = vmatprep.subr.bf16.mxu0 0
  %611 = vmatpush2.bf16.msra.mxu0 0
  %612 = vmatprep.subr.bf16.mxu0 0
  %613 = vmatpush2.bf16.msra.mxu0 0
  %614 = vmatprep.subr.bf16.mxu0 0
  %615 = vmatpush2.bf16.msra.mxu0 0
  %616 = vmatprep.subr.bf16.mxu0 0
  %617 = vmatpush2.bf16.msra.mxu0 0
  %618 = vmatprep.subr.bf16.mxu0 0
  %619 = vmatpush2.bf16.msra.mxu0 0
  %620 = vmatprep.mubr.bf16.mxu0 0
  %621 = vmatmul.mubr.bf16.gmra.mxu0 %v586
  %v622 = vpop.f32.mrf.mxu0
  %v623 = vadd.f32 %v472, %v622
  %v624 = vpop.f32.mrf.mxu0
  %v625 = vpop.f32.mrf.mxu0
  %v626 = vadd.f32 %v472, %v625
  %v627 = vpop.f32.mrf.mxu0
  %628 = vdwg.mxu0
  %629 = vst.msk [vmem:[%s6 + $0x10] sm:$0xff] %vm130, %v623
  %630 = vst.msk [vmem:[%s6 + $0x18] sm:$0xff] %vm130, %v626
  // Predicated region
  $region26: #{tpu_custom_call.1} parent=0 // pred_check
    _
  $region27: #{tpu_custom_call.1} parent=0 // pred_check_branch
    %632 = sbr.rel (0) target = $region29
  $region28: #{tpu_custom_call.1} parent=0 // pred_region
    _
  $region29: #{tpu_custom_call.1} parent=0 // pred_fallthru
    _
  // Predicated region
  $region30: #{tpu_custom_call.1} parent=0 // pred_check
    _
  $region31: #{tpu_custom_call.1} parent=0 // pred_check_branch
    %634 = sbr.rel (0) target = $region33
  $region32: #{tpu_custom_call.1} parent=0 // pred_region
    _
  $region33: #{tpu_custom_call.1} parent=0 // pred_fallthru
    _

</llo_original>
